<compile_context>
chip_gen: v6e
topology: v6e:2x2x1
jax: 0.10.0
libtpu: 0.0.40
codegen_flags: <defaults>
</compile_context>

<pallas_src>
import functools
import math

import jax
import jax.numpy as jnp
import numpy as np
from jax import lax
from jax.experimental import pallas as pl
from jax.experimental.pallas import tpu as pltpu

_VMEM_LIMIT = 48 * 1024 * 1024   # <= v7x physical (64 MiB); > 32 MiB default on v5e/v6e
_NEG_INF = -1e30                 # finite mask value keeps fully-masked rows NaN-free


# ---------------------------------------------------------------------------
# Tiling helpers
# ---------------------------------------------------------------------------
def _pick_row_tile(n, candidates=(512, 256, 128, 64, 32, 16, 8)):
    """Largest sublane-axis tile (multiple of 8) dividing n, else full n."""
    for c in candidates:
        if c <= n and n % c == 0:
            return c
    return n


def _pick_lane_tile(n, candidates=(512, 384, 256, 128)):
    """Largest lane-axis tile (multiple of 128) dividing n, else full n (legal)."""
    for c in candidates:
        if c <= n and n % c == 0:
            return c
    return n


def _attn_q_tile(T, C, n_head, budget_bytes=36 * 1024 * 1024):
    """Largest q tile whose double-buffered attention working set fits the budget."""
    divisors = [c for c in (512, 256, 128, 64, 32, 16, 8) if c <= T and T % c == 0]
    if not divisors:
        return T
    for tq in divisors:
        working = (
            2 * n_head * tq * T * 2   # double-buffered bf16 att block
            + 2 * 2 * T * C * 2       # double-buffered K and V row blocks
            + 2 * 2 * tq * C * 2      # double-buffered q-in and y-out blocks
            + 2 * tq * T * 4          # f32 scores / probs live per head
        )
        if working <= budget_bytes:
            return tq
    return divisors[-1]


# ---------------------------------------------------------------------------
# Fused QKV projection kernel: q/k/v = x @ Wq/k/v + bq/k/v, emitted head-row
# layout (B, T, C) so attention needs no XLA-side re-layout.
#   x block: (1, tm, C)   W blocks: (C, tn)   bias block: (3, tn)
# bf16 MXU inputs, f32 accumulation.
# ---------------------------------------------------------------------------
def _qkv_kernel(x_ref, wq_ref, wk_ref, wv_ref, b_ref, q_ref, k_ref, v_ref):
    x = x_ref[0].astype(jnp.bfloat16)                        # (tm, C)
    b = b_ref[...]                                           # (3, tn) f32
    q_ref[0] = (jnp.dot(x, wq_ref[...], preferred_element_type=jnp.float32)
                + b[0:1]).astype(q_ref.dtype)
    k_ref[0] = (jnp.dot(x, wk_ref[...], preferred_element_type=jnp.float32)
                + b[1:2]).astype(k_ref.dtype)
    v_ref[0] = (jnp.dot(x, wv_ref[...], preferred_element_type=jnp.float32)
                + b[2:3]).astype(v_ref.dtype)


def _qkv_projection(x, wq, wk, wv, bqkv):
    B, T, C = x.shape
    tm = _pick_row_tile(T)
    tn = _pick_lane_tile(C)
    out_spec = pl.BlockSpec((1, tm, tn), lambda b, j, i: (b, i, j))
    w_spec = pl.BlockSpec((C, tn), lambda b, j, i: (0, j))
    return pl.pallas_call(
        _qkv_kernel,
        out_shape=tuple(jax.ShapeDtypeStruct((B, T, C), jnp.bfloat16) for _ in range(3)),
        grid_spec=pltpu.PrefetchScalarGridSpec(
            num_scalar_prefetch=0,
            # Row axis innermost: weight tiles fetched once, x streamed.
            grid=(B, C // tn, T // tm),
            in_specs=[
                pl.BlockSpec((1, tm, C), lambda b, j, i: (b, i, 0)),   # x rows
                w_spec, w_spec, w_spec,                                # Wq, Wk, Wv
                pl.BlockSpec((3, tn), lambda b, j, i: (0, j)),         # stacked bias
            ],
            out_specs=[out_spec, out_spec, out_spec],
        ),
        compiler_params=pltpu.CompilerParams(
            dimension_semantics=("parallel", "parallel", "parallel"),
            vmem_limit_bytes=_VMEM_LIMIT),
    )(x, wq, wk, wv, bqkv)


# ---------------------------------------------------------------------------
# Output projection kernel: y = x @ Wp + bp.
# ---------------------------------------------------------------------------
def _linear_kernel(x_ref, w_ref, b_ref, o_ref):
    x = x_ref[0].astype(jnp.bfloat16)                        # (tm, C_in)
    acc = jnp.dot(x, w_ref[...], preferred_element_type=jnp.float32)
    o_ref[0] = (acc + b_ref[...]).astype(o_ref.dtype)


def _linear(x, w_bf16, b_f32, out_dtype):
    B, T, C_in = x.shape
    C_out = w_bf16.shape[1]
    tm = _pick_row_tile(T)
    tn = _pick_lane_tile(C_out)
    return pl.pallas_call(
        _linear_kernel,
        out_shape=jax.ShapeDtypeStruct((B, T, C_out), out_dtype),
        grid_spec=pltpu.PrefetchScalarGridSpec(
            num_scalar_prefetch=0,
            grid=(B, C_out // tn, T // tm),
            in_specs=[
                pl.BlockSpec((1, tm, C_in), lambda b, j, i: (b, i, 0)),
                pl.BlockSpec((C_in, tn), lambda b, j, i: (0, j)),
                pl.BlockSpec((1, tn), lambda b, j, i: (0, j)),
            ],
            out_specs=pl.BlockSpec((1, tm, tn), lambda b, j, i: (b, i, j)),
        ),
        compiler_params=pltpu.CompilerParams(
            dimension_semantics=("parallel", "parallel", "parallel"),
            vmem_limit_bytes=_VMEM_LIMIT),
    )(x, w_bf16, b_f32)


# ---------------------------------------------------------------------------
# Attention kernel.  One grid step = (batch b, q-tile i), ALL heads per step.
#   q block : (1, tq, C)  bf16, already scaled by 1/sqrt(hd)
#   k, v    : (1, T,  C)  bf16 (full key/value rows; constant across q-tiles)
#   outputs : att block (1, nh, tq, T) bf16 (attn_save),
#             y block   (1, tq, C)    bf16 (lane-dense, already head-concatenated)
# ---------------------------------------------------------------------------
def _attn_kernel(q_ref, k_ref, v_ref, att_ref, y_ref, *, n_head, head_dim):
    qi = pl.program_id(1)
    q = q_ref[0]                                             # (tq, C) bf16
    k = k_ref[0]                                             # (T,  C) bf16
    v = v_ref[0]                                             # (T,  C) bf16
    tq = q.shape[0]
    T = k.shape[0]

    # Causal mask built once per q-tile, shared across all heads.
    row = lax.broadcasted_iota(jnp.int32, (tq, T), 0) + qi * tq
    col = lax.broadcasted_iota(jnp.int32, (tq, T), 1)
    causal = row >= col

    y_parts = []
    for h in range(n_head):                                  # static unroll over heads
        lo, hi = h * head_dim, (h + 1) * head_dim
        qh = q[:, lo:hi]                                     # (tq, hd)
        kh = k[:, lo:hi]                                     # (T,  hd)
        vh = v[:, lo:hi]                                     # (T,  hd)

        # scores = q @ k^T on the MXU, f32 accumulation (scale folded into q).
        s = lax.dot_general(qh, kh, (((1,), (1,)), ((), ())),
                            preferred_element_type=jnp.float32)   # (tq, T)
        s = jnp.where(causal, s, _NEG_INF)

        # Numerically stable softmax in f32; exact reciprocal since these
        # probabilities are returned as attn_save.
        s = s - jnp.max(s, axis=-1, keepdims=True)
        p = jnp.exp(s)
        p = p * pl.reciprocal(jnp.sum(p, axis=-1, keepdims=True), approx=False)

        att_ref[0, h] = p.astype(att_ref.dtype)              # bf16 attn_save tile
        y_parts.append(jnp.dot(p.astype(vh.dtype), vh,
                               preferred_element_type=jnp.float32))

    # Lane-dense (tq, C) store of all heads at once.
    y_ref[0] = jnp.concatenate(y_parts, axis=-1).astype(y_ref.dtype)


def _attention(q, k, v, n_head):
    B, T, C = q.shape
    hd = C // n_head
    tq = _attn_q_tile(T, C, n_head)
    kernel = functools.partial(_attn_kernel, n_head=n_head, head_dim=hd)
    att, y = pl.pallas_call(
        kernel,
        out_shape=(
            jax.ShapeDtypeStruct((B, n_head, T, T), jnp.bfloat16),   # attn_save
            jax.ShapeDtypeStruct((B, T, C), jnp.bfloat16),           # pre-proj y
        ),
        grid_spec=pltpu.PrefetchScalarGridSpec(
            num_scalar_prefetch=0,
            grid=(B, T // tq),
            in_specs=[
                pl.BlockSpec((1, tq, C), lambda b, i: (b, i, 0)),    # q rows
                pl.BlockSpec((1, T, C), lambda b, i: (b, 0, 0)),     # k rows (resident per b)
                pl.BlockSpec((1, T, C), lambda b, i: (b, 0, 0)),     # v rows (resident per b)
            ],
            out_specs=[
                pl.BlockSpec((1, n_head, tq, T), lambda b, i: (b, 0, i, 0)),
                pl.BlockSpec((1, tq, C), lambda b, i: (b, i, 0)),
            ],
        ),
        compiler_params=pltpu.CompilerParams(
            dimension_semantics=("parallel", "parallel"),
            vmem_limit_bytes=_VMEM_LIMIT),
    )(q, k, v)
    return att, y


def causal_self_attention(x, params, n_head):
    """x: (B, T, C) float32.  params: PyTorch-convention (out, in) weights."""
    B, T, C = x.shape
    assert C % n_head == 0
    hd = C // n_head
    scale = 1.0 / math.sqrt(hd)

    # Transposed bf16 weights for the MXU; attention scale folded into Q.
    wq = (params["wq"].T * scale).astype(jnp.bfloat16)
    wk = params["wk"].T.astype(jnp.bfloat16)
    wv = params["wv"].T.astype(jnp.bfloat16)
    bqkv = jnp.stack([params["bq"] * scale, params["bk"], params["bv"]]
                     ).astype(jnp.float32)                    # (3, C)
    wp = params["wp"].T.astype(jnp.bfloat16)
    bp = params["bp"].reshape(1, C).astype(jnp.float32)

    # 1) Fused QKV projection; emits q/k/v directly (no XLA re-layout needed).
    q, k, v = _qkv_projection(x, wq, wk, wv, bqkv)            # each (B, T, C) bf16

    # 2) Attention: all heads per grid step, lane-dense y, bf16 attn_save.
    att, y_att = _attention(q, k, v, n_head)

    # 3) Output projection (dropout = identity in eval mode).
    y = _linear(y_att, wp, bp, x.dtype)                       # (B, T, C) f32
    return y, att


def _reference(x, params, n_head):
    """Pure-JAX f32 reference mirroring the PyTorch forward (dropout = identity)."""
    B, T, C = x.shape
    hd = C // n_head

    def lin(t, w, b):
        return t @ w.T + b

    def split(t):
        return t.reshape(B, T, n_head, hd).transpose(0, 2, 1, 3)   # (B, nh, T, hd)

    q = split(lin(x, params["wq"], params["bq"]))
    k = split(lin(x, params["wk"], params["bk"]))
    v = split(lin(x, params["wv"], params["bv"]))

    att = jnp.einsum("bhqd,bhkd->bhqk", q, k) * (1.0 / math.sqrt(hd))
    mask = jnp.tril(jnp.ones((T, T), dtype=bool))
    att = jnp.where(mask[None, None], att, -jnp.inf)
    att = jax.nn.softmax(att, axis=-1)
    y = jnp.einsum("bhqk,bhkd->bhqd", att, v)
    y = y.transpose(0, 2, 1, 3).reshape(B, T, C)
    y = lin(y, params["wp"], params["bp"])
    return y, att


if __name__ == "__main__":
    # Small config: batch=2, seq=8, n_embd=32, n_head=4 (head dim 8).
    B, T, C, n_head = 2, 8, 32, 4

    key = jax.random.PRNGKey(0)
    keys = jax.random.split(key, 10)
    s = 0.02
    params = {
        "wq": s * jax.random.normal(keys[0], (C, C), jnp.float32),
        "bq": s * jax.random.normal(keys[1], (C,), jnp.float32),
        "wk": s * jax.random.normal(keys[2], (C, C), jnp.float32),
        "bk": s * jax.random.normal(keys[3], (C,), jnp.float32),
        "wv": s * jax.random.normal(keys[4], (C, C), jnp.float32),
        "bv": s * jax.random.normal(keys[5], (C,), jnp.float32),
        "wp": s * jax.random.normal(keys[6], (C, C), jnp.float32),
        "bp": s * jax.random.normal(keys[7], (C,), jnp.float32),
    }
    x = jax.random.normal(keys[8], (B, T, C), jnp.float32)

    y, att = causal_self_attention(x, params, n_head)
    y = jax.block_until_ready(y)
    att = jax.block_until_ready(att)

    y_ref, att_ref = _reference(x, params, n_head)
    # bf16 MXU inputs + bf16 attn_save -> modest tolerances vs f32 reference.
    np.testing.assert_allclose(np.asarray(y).astype(np.float32),
                               np.asarray(y_ref), rtol=2e-2, atol=2e-2)
    np.testing.assert_allclose(np.asarray(att).astype(np.float32),
                               np.asarray(att_ref), rtol=2e-2, atol=2e-2)

    print("KERNEL_OK")
</pallas_src>

<mosaic_0001>
module attributes {stable_mosaic.version = 11 : i64} {
  func.func @_qkv_kernel(%arg0: i32, %arg1: i32, %arg2: i32, %arg3: memref<1x8x32xf32, #tpu.memory_space<vmem>>, %arg4: memref<32x32xbf16, #tpu.memory_space<vmem>>, %arg5: memref<32x32xbf16, #tpu.memory_space<vmem>>, %arg6: memref<32x32xbf16, #tpu.memory_space<vmem>>, %arg7: memref<3x32xf32, #tpu.memory_space<vmem>>, %arg8: memref<1x8x32xbf16, #tpu.memory_space<vmem>>, %arg9: memref<1x8x32xbf16, #tpu.memory_space<vmem>>, %arg10: memref<1x8x32xbf16, #tpu.memory_space<vmem>>) attributes {dimension_semantics = [#tpu.dimension_semantics<parallel>, #tpu.dimension_semantics<parallel>, #tpu.dimension_semantics<parallel>], iteration_bounds = array<i64: 2, 1, 1>, scalar_prefetch = 0 : i64, scratch_operands = 0 : i64, tpu.core_type = #tpu.core_type<tc>, window_params = [{transform_indices = @transform_0, window_bounds = array<i64: 1, 8, 32>}, {transform_indices = @transform_1, window_bounds = array<i64: 32, 32>}, {transform_indices = @transform_2, window_bounds = array<i64: 32, 32>}, {transform_indices = @transform_3, window_bounds = array<i64: 32, 32>}, {transform_indices = @transform_4, window_bounds = array<i64: 3, 32>}, {transform_indices = @transform_5, window_bounds = array<i64: 1, 8, 32>}, {transform_indices = @transform_6, window_bounds = array<i64: 1, 8, 32>}, {transform_indices = @transform_7, window_bounds = array<i64: 1, 8, 32>}]} {
    %c0 = arith.constant 0 : index
    %c0_0 = arith.constant 0 : index
    %c0_1 = arith.constant 0 : index
    %0 = vector.load %arg3[%c0, %c0_0, %c0_1] : memref<1x8x32xf32, #tpu.memory_space<vmem>>, vector<1x8x32xf32>
    %1 = vector.shape_cast %0 : vector<1x8x32xf32> to vector<8x32xf32>
    %2 = arith.truncf %1 : vector<8x32xf32> to vector<8x32xbf16>
    %c0_2 = arith.constant 0 : index
    %c0_3 = arith.constant 0 : index
    %3 = vector.load %arg7[%c0_2, %c0_3] : memref<3x32xf32, #tpu.memory_space<vmem>>, vector<3x32xf32>
    %c0_4 = arith.constant 0 : index
    %c0_5 = arith.constant 0 : index
    %4 = vector.load %arg4[%c0_4, %c0_5] : memref<32x32xbf16, #tpu.memory_space<vmem>>, vector<32x32xbf16>
    %cst = arith.constant dense<0.000000e+00> : vector<8x32xf32>
    %5 = tpu.matmul %2, %4, %cst {dimension_numbers = #tpu.dot_dimension_numbers<[1], [0], [0], [1], [0, 0, 1, 1], [], []>} : vector<8x32xbf16>, vector<32x32xbf16>, vector<8x32xf32> -> vector<8x32xf32>
    %6 = vector.extract_strided_slice %3 {offsets = [0, 0], sizes = [1, 32], strides = [1, 1]} : vector<3x32xf32> to vector<1x32xf32>
    %7 = vector.broadcast %6 : vector<1x32xf32> to vector<8x32xf32>
    %8 = arith.addf %5, %7 : vector<8x32xf32>
    %9 = arith.truncf %8 : vector<8x32xf32> to vector<8x32xbf16>
    %c0_6 = arith.constant 0 : index
    %c0_7 = arith.constant 0 : index
    %c0_8 = arith.constant 0 : index
    %10 = vector.load %arg8[%c0_6, %c0_7, %c0_8] : memref<1x8x32xbf16, #tpu.memory_space<vmem>>, vector<1x8x32xbf16>
    %11 = vector.shape_cast %10 : vector<1x8x32xbf16> to vector<8x32xbf16>
    %12 = vector.shape_cast %9 : vector<8x32xbf16> to vector<1x8x32xbf16>
    tpu.vector_store %arg8[%c0_6, %c0_7, %c0_8], %12 {strides = array<i32>} : memref<1x8x32xbf16, #tpu.memory_space<vmem>>, vector<1x8x32xbf16>,
    %c0_9 = arith.constant 0 : index
    %c0_10 = arith.constant 0 : index
    %13 = vector.load %arg5[%c0_9, %c0_10] : memref<32x32xbf16, #tpu.memory_space<vmem>>, vector<32x32xbf16>
    %cst_11 = arith.constant dense<0.000000e+00> : vector<8x32xf32>
    %14 = tpu.matmul %2, %13, %cst_11 {dimension_numbers = #tpu.dot_dimension_numbers<[1], [0], [0], [1], [0, 0, 1, 1], [], []>} : vector<8x32xbf16>, vector<32x32xbf16>, vector<8x32xf32> -> vector<8x32xf32>
    %15 = vector.extract_strided_slice %3 {offsets = [1, 0], sizes = [1, 32], strides = [1, 1]} : vector<3x32xf32> to vector<1x32xf32>
    %16 = vector.broadcast %15 : vector<1x32xf32> to vector<8x32xf32>
    %17 = arith.addf %14, %16 : vector<8x32xf32>
    %18 = arith.truncf %17 : vector<8x32xf32> to vector<8x32xbf16>
    %c0_12 = arith.constant 0 : index
    %c0_13 = arith.constant 0 : index
    %c0_14 = arith.constant 0 : index
    %19 = vector.load %arg9[%c0_12, %c0_13, %c0_14] : memref<1x8x32xbf16, #tpu.memory_space<vmem>>, vector<1x8x32xbf16>
    %20 = vector.shape_cast %19 : vector<1x8x32xbf16> to vector<8x32xbf16>
    %21 = vector.shape_cast %18 : vector<8x32xbf16> to vector<1x8x32xbf16>
    tpu.vector_store %arg9[%c0_12, %c0_13, %c0_14], %21 {strides = array<i32>} : memref<1x8x32xbf16, #tpu.memory_space<vmem>>, vector<1x8x32xbf16>,
    %c0_15 = arith.constant 0 : index
    %c0_16 = arith.constant 0 : index
    %22 = vector.load %arg6[%c0_15, %c0_16] : memref<32x32xbf16, #tpu.memory_space<vmem>>, vector<32x32xbf16>
    %cst_17 = arith.constant dense<0.000000e+00> : vector<8x32xf32>
    %23 = tpu.matmul %2, %22, %cst_17 {dimension_numbers = #tpu.dot_dimension_numbers<[1], [0], [0], [1], [0, 0, 1, 1], [], []>} : vector<8x32xbf16>, vector<32x32xbf16>, vector<8x32xf32> -> vector<8x32xf32>
    %24 = vector.extract_strided_slice %3 {offsets = [2, 0], sizes = [1, 32], strides = [1, 1]} : vector<3x32xf32> to vector<1x32xf32>
    %25 = vector.broadcast %24 : vector<1x32xf32> to vector<8x32xf32>
    %26 = arith.addf %23, %25 : vector<8x32xf32>
    %27 = arith.truncf %26 : vector<8x32xf32> to vector<8x32xbf16>
    %c0_18 = arith.constant 0 : index
    %c0_19 = arith.constant 0 : index
    %c0_20 = arith.constant 0 : index
    %28 = vector.load %arg10[%c0_18, %c0_19, %c0_20] : memref<1x8x32xbf16, #tpu.memory_space<vmem>>, vector<1x8x32xbf16>
    %29 = vector.shape_cast %28 : vector<1x8x32xbf16> to vector<8x32xbf16>
    %30 = vector.shape_cast %27 : vector<8x32xbf16> to vector<1x8x32xbf16>
    tpu.vector_store %arg10[%c0_18, %c0_19, %c0_20], %30 {strides = array<i32>} : memref<1x8x32xbf16, #tpu.memory_space<vmem>>, vector<1x8x32xbf16>,
    return
  }
  func.func @transform_0(%arg0: i32, %arg1: i32, %arg2: i32) -> (i32, i32, i32) {
    %c0_i32 = arith.constant 0 : i32
    %c0_i32_0 = arith.constant 0 : i32
    return %arg0, %arg2, %c0_i32 : i32, i32, i32
  }
  func.func @transform_1(%arg0: i32, %arg1: i32, %arg2: i32) -> (i32, i32) {
    %c0_i32 = arith.constant 0 : i32
    %c0_i32_0 = arith.constant 0 : i32
    return %c0_i32, %arg1 : i32, i32
  }
  func.func @transform_2(%arg0: i32, %arg1: i32, %arg2: i32) -> (i32, i32) {
    %c0_i32 = arith.constant 0 : i32
    %c0_i32_0 = arith.constant 0 : i32
    return %c0_i32, %arg1 : i32, i32
  }
  func.func @transform_3(%arg0: i32, %arg1: i32, %arg2: i32) -> (i32, i32) {
    %c0_i32 = arith.constant 0 : i32
    %c0_i32_0 = arith.constant 0 : i32
    return %c0_i32, %arg1 : i32, i32
  }
  func.func @transform_4(%arg0: i32, %arg1: i32, %arg2: i32) -> (i32, i32) {
    %c0_i32 = arith.constant 0 : i32
    %c0_i32_0 = arith.constant 0 : i32
    return %c0_i32, %arg1 : i32, i32
  }
  func.func @transform_5(%arg0: i32, %arg1: i32, %arg2: i32) -> (i32, i32, i32) {
    %c0_i32 = arith.constant 0 : i32
    return %arg0, %arg2, %arg1 : i32, i32, i32
  }
  func.func @transform_6(%arg0: i32, %arg1: i32, %arg2: i32) -> (i32, i32, i32) {
    %c0_i32 = arith.constant 0 : i32
    return %arg0, %arg2, %arg1 : i32, i32, i32
  }
  func.func @transform_7(%arg0: i32, %arg1: i32, %arg2: i32) -> (i32, i32, i32) {
    %c0_i32 = arith.constant 0 : i32
    return %arg0, %arg2, %arg1 : i32, i32, i32
  }
}

</mosaic_0001>

<llo_original>
// kernel: tpu_custom_call.1
$region0: #{tpu_custom_call.1}
  #allocation0 [shape = 'u32[]', space=smem, size = 0x4, offset = 0x4, fixed_abs, tag = 'smem constant byte address 0x4 - core index']
  #allocation1 [shape = 'u32[144,128]{1,0:T(1,128)}', space=vmem, size = 0x12000, scoped, tag = 'internal scratch']
  %s0 = inlined_call_operand.hbm [shape: f32[2,8,32], index: 0, kind: input, shape index: {}]
  %s1 = inlined_call_operand.hbm [shape: bf16[32,32], index: 1, kind: input, shape index: {}]
  %s2 = inlined_call_operand.hbm [shape: bf16[32,32], index: 2, kind: input, shape index: {}]
  %s3 = inlined_call_operand.hbm [shape: bf16[32,32], index: 3, kind: input, shape index: {}]
  %s4 = inlined_call_operand.vmem [shape: f32[3,32], index: 4, kind: input, shape index: {}]
  %s5 = inlined_call_operand.hbm [shape: bf16[2,8,32], index: 5, kind: output, shape index: {0}]
  %s6 = inlined_call_operand.hbm [shape: bf16[2,8,32], index: 6, kind: output, shape index: {1}]
  %s7 = inlined_call_operand.hbm [shape: bf16[2,8,32], index: 7, kind: output, shape index: {2}]
  %8 = xla_tuple %s5, %s6, %s7
  %s9 = sld [smem:[#allocation0]]
  $region85: #{tpu_custom_call.1} parent=0
    _
  %s11 = ssub.s32 1, %s9
  %s12 = scalar_select 0, %s11, %s9
  $region1: #{tpu_custom_call.1} parent=0
    #allocation2 [shape = 'u8[8192]{0}', space=vmem, size = 0x2000, scoped, tag = 'input window, operand 0']
    #allocation3 [shape = 's32[2]{0}', space=sflag, size = 0x8, scoped, tag = 'scoped memory for tpu_custom_call.1']
    #allocation4 [shape = 's32[2]{0}', space=sflag, size = 0x8, scoped, tag = 'scoped memory for tpu_custom_call.1']
    #allocation5 [shape = 'u8[8192]{0}', space=vmem, size = 0x2000, scoped, tag = 'input window, operand 1, single buffered']
    #allocation6 [shape = 's32[1]{0}', space=sflag, size = 0x4, scoped, tag = 'scoped memory for tpu_custom_call.1']
    #allocation7 [shape = 'u8[8192]{0}', space=vmem, size = 0x2000, scoped, tag = 'input window, operand 2, single buffered']
    #allocation8 [shape = 'u8[8192]{0}', space=vmem, size = 0x2000, scoped, tag = 'input window, operand 3, single buffered']
    #allocation9 [shape = 's32[1]{0}', space=sflag, size = 0x4, scoped, tag = 'scoped memory for tpu_custom_call.1']
    #allocation10 [shape = 'u8[4096]{0}', space=vmem, size = 0x1000, scoped, tag = 'output window, operand 0']
    #allocation11 [shape = 'u8[4096]{0}', space=vmem, size = 0x1000, scoped, tag = 'output window, operand 1']
    #allocation12 [shape = 's32[2]{0}', space=sflag, size = 0x8, scoped, tag = 'scoped memory for tpu_custom_call.1']
    #allocation13 [shape = 'u8[4096]{0}', space=vmem, size = 0x1000, scoped, tag = 'output window, operand 2']
    %13 = vsyncpa [#allocation3], 0
    %s14 = scalar_lea.sflag [#allocation3], 1
    %15 = vsyncpa %s14, 0
    %16 = vsyncpa [#allocation6], 0
    %17 = vsyncpa [#allocation9], 0
    %18 = vsyncpa [#allocation4], 0
    %s19 = scalar_lea.sflag [#allocation4], 1
    %20 = vsyncpa %s19, 0
    %21 = vsyncpa [#allocation12], 0
    %s22 = scalar_lea.sflag [#allocation12], 1
    %23 = vsyncpa %s22, 0
    loop: start=0, step=1, limit=4
    $region2: #{tpu_custom_call.1} parent=1 // loop_pre_header
      _
    $region3: #{tpu_custom_call.1} parent=1 // loop_header
      %s25 = sphi 0, %s29
      %p26 = scmp.ge.s32.totalorder %s25, 4
      %s32 = sphi 0, %s51
      %s33 = sphi 0, %s47
      %s34 = sphi 0, %s43
      %s35 = sphi 0, %s32
      %s36 = sphi 0, %s33
      %s37 = sphi 0, %s34
      %s38 = sphi 0, %s35
      %s39 = sphi 0, %s36
      %s40 = sphi 0, %s37
      %s56 = sphi 0, %s58
      %s59 = sphi 0, %s56
      %s60 = sphi 0, %s59
      %s76 = sphi 0, %s60
      %s82 = sphi 0, %s84
      %s85 = sphi 0, %s82
      %s86 = sphi 0, %s85
      %s102 = sphi 0, %s86
      %s108 = sphi 0, %s110
      %s111 = sphi 0, %s108
      %s112 = sphi 0, %s111
      %s128 = sphi 0, %s112
      %s134 = sphi 0, %s136
      %s137 = sphi 0, %s134
      %s138 = sphi 0, %s137
      %s154 = sphi 0, %s138
      %s160 = sphi 0, %s162
      %s163 = sphi 0, %s160
      %s164 = sphi 0, %s163
      %s180 = sphi 0, %s164
      %s190 = sphi 0, %s192
      %s193 = sphi 0, %s190
      %s194 = sphi 0, %s193
      %s210 = sphi 0, %s194
      %s220 = sphi 0, %s222
      %s223 = sphi 0, %s220
      %s224 = sphi 0, %s223
      %s240 = sphi 0, %s224
      %s250 = sphi 0, %s252
      %s253 = sphi 0, %s250
      %s254 = sphi 0, %s253
      %s270 = sphi 0, %s254
    $region4: #{tpu_custom_call.1} parent=1 // loop_header_branch
      %28 = sbr.rel (%p26) target = $region8
    $region5: #{tpu_custom_call.1} parent=1 // loop_body
      %s30 = ssub.s32 %s25, 1
      %s31 = ssub.s32 %s25, 2
      %s41 = sadd.s32 1, %s34
      %p42 = scmp.ge.s32.totalorder %s41, 1
      %s43 = scalar_select %p42, 0, %s41
      %s44 = sadd.s32 1, %s33
      %s45 = scalar_select %p42, %s44, %s33
      %p46 = scmp.ge.s32.totalorder %s45, 1
      %s47 = scalar_select %p46, 0, %s45
      %s48 = sadd.s32 1, %s32
      %s49 = scalar_select %p46, %s48, %s32
      %p50 = scmp.ge.s32.totalorder %s49, 2
      %s51 = scalar_select %p50, 0, %s49
      %s52 = ssub.s32 %s32, %s51
      %s53 = ssub.s32 %s34, %s43
      %s54 = sor.u32 %s52, %s53
      %p55 = scmp.eq.s32.totalorder %s54, 0
      %s57 = sadd.s32 %s56, 1
      %s58 = scalar_select %p55, %s56, %s57
      %p61 = pneg %p55
      %p62 = scmp.eq.s32.totalorder %s25, 1
      %p63 = por %p61, %p62
      %p64 = scmp.ne.s32.totalorder %s56, %s59
      %p65 = scmp.eq.s32.totalorder %s25, 0
      %p66 = por %p64, %p65
      %p67 = scmp.ne.s32.totalorder %s56, %s59
      %p68 = scmp.eq.s32.totalorder %s30, 1
      %p69 = por %p67, %p68
      %p70 = scmp.ne.s32.totalorder %s59, %s60
      %p71 = scmp.eq.s32.totalorder %s30, 0
      %p72 = por %p70, %p71
      %p73 = scmp.ne.s32.totalorder %s59, %s60
      %p74 = scmp.eq.s32.totalorder %s31, 1
      %p75 = por %p73, %p74
      %p77 = scmp.ne.s32.totalorder %s60, %s76
      %p78 = scmp.eq.s32.totalorder %s31, 0
      %p79 = por %p77, %p78
      %s80 = ssub.s32 %s33, %s47
      %p81 = scmp.eq.s32.totalorder %s80, 0
      %s83 = sadd.s32 %s82, 1
      %s84 = scalar_select %p81, %s82, %s83
      %p87 = pneg %p81
      %p88 = scmp.eq.s32.totalorder %s25, 1
      %p89 = por %p87, %p88
      %p90 = scmp.ne.s32.totalorder %s82, %s85
      %p91 = scmp.eq.s32.totalorder %s25, 0
      %p92 = por %p90, %p91
      %p93 = scmp.ne.s32.totalorder %s82, %s85
      %p94 = scmp.eq.s32.totalorder %s30, 1
      %p95 = por %p93, %p94
      %p96 = scmp.ne.s32.totalorder %s85, %s86
      %p97 = scmp.eq.s32.totalorder %s30, 0
      %p98 = por %p96, %p97
      %p99 = scmp.ne.s32.totalorder %s85, %s86
      %p100 = scmp.eq.s32.totalorder %s31, 1
      %p101 = por %p99, %p100
      %p103 = scmp.ne.s32.totalorder %s86, %s102
      %p104 = scmp.eq.s32.totalorder %s31, 0
      %p105 = por %p103, %p104
      %s106 = ssub.s32 %s33, %s47
      %p107 = scmp.eq.s32.totalorder %s106, 0
      %s109 = sadd.s32 %s108, 1
      %s110 = scalar_select %p107, %s108, %s109
      %p113 = pneg %p107
      %p114 = scmp.eq.s32.totalorder %s25, 1
      %p115 = por %p113, %p114
      %p116 = scmp.ne.s32.totalorder %s108, %s111
      %p117 = scmp.eq.s32.totalorder %s25, 0
      %p118 = por %p116, %p117
      %p119 = scmp.ne.s32.totalorder %s108, %s111
      %p120 = scmp.eq.s32.totalorder %s30, 1
      %p121 = por %p119, %p120
      %p122 = scmp.ne.s32.totalorder %s111, %s112
      %p123 = scmp.eq.s32.totalorder %s30, 0
      %p124 = por %p122, %p123
      %p125 = scmp.ne.s32.totalorder %s111, %s112
      %p126 = scmp.eq.s32.totalorder %s31, 1
      %p127 = por %p125, %p126
      %p129 = scmp.ne.s32.totalorder %s112, %s128
      %p130 = scmp.eq.s32.totalorder %s31, 0
      %p131 = por %p129, %p130
      %s132 = ssub.s32 %s33, %s47
      %p133 = scmp.eq.s32.totalorder %s132, 0
      %s135 = sadd.s32 %s134, 1
      %s136 = scalar_select %p133, %s134, %s135
      %p139 = pneg %p133
      %p140 = scmp.eq.s32.totalorder %s25, 1
      %p141 = por %p139, %p140
      %p142 = scmp.ne.s32.totalorder %s134, %s137
      %p143 = scmp.eq.s32.totalorder %s25, 0
      %p144 = por %p142, %p143
      %p145 = scmp.ne.s32.totalorder %s134, %s137
      %p146 = scmp.eq.s32.totalorder %s30, 1
      %p147 = por %p145, %p146
      %p148 = scmp.ne.s32.totalorder %s137, %s138
      %p149 = scmp.eq.s32.totalorder %s30, 0
      %p150 = por %p148, %p149
      %p151 = scmp.ne.s32.totalorder %s137, %s138
      %p152 = scmp.eq.s32.totalorder %s31, 1
      %p153 = por %p151, %p152
      %p155 = scmp.ne.s32.totalorder %s138, %s154
      %p156 = scmp.eq.s32.totalorder %s31, 0
      %p157 = por %p155, %p156
      %s158 = ssub.s32 %s33, %s47
      %p159 = scmp.eq.s32.totalorder %s158, 0
      %s161 = sadd.s32 %s160, 1
      %s162 = scalar_select %p159, %s160, %s161
      %p165 = pneg %p159
      %p166 = scmp.eq.s32.totalorder %s25, 1
      %p167 = por %p165, %p166
      %p168 = scmp.ne.s32.totalorder %s160, %s163
      %p169 = scmp.eq.s32.totalorder %s25, 0
      %p170 = por %p168, %p169
      %p171 = scmp.ne.s32.totalorder %s160, %s163
      %p172 = scmp.eq.s32.totalorder %s30, 1
      %p173 = por %p171, %p172
      %p174 = scmp.ne.s32.totalorder %s163, %s164
      %p175 = scmp.eq.s32.totalorder %s30, 0
      %p176 = por %p174, %p175
      %p177 = scmp.ne.s32.totalorder %s163, %s164
      %p178 = scmp.eq.s32.totalorder %s31, 1
      %p179 = por %p177, %p178
      %p181 = scmp.ne.s32.totalorder %s164, %s180
      %p182 = scmp.eq.s32.totalorder %s31, 0
      %p183 = por %p181, %p182
      %s184 = ssub.s32 %s32, %s51
      %s185 = ssub.s32 %s34, %s43
      %s186 = sor.u32 %s184, %s185
      %s187 = ssub.s32 %s33, %s47
      %s188 = sor.u32 %s186, %s187
      %p189 = scmp.eq.s32.totalorder %s188, 0
      %s191 = sadd.s32 %s190, 1
      %s192 = scalar_select %p189, %s190, %s191
      %p195 = pneg %p189
      %p196 = scmp.eq.s32.totalorder %s25, 1
      %p197 = por %p195, %p196
      %p198 = scmp.ne.s32.totalorder %s190, %s193
      %p199 = scmp.eq.s32.totalorder %s25, 0
      %p200 = por %p198, %p199
      %p201 = scmp.ne.s32.totalorder %s190, %s193
      %p202 = scmp.eq.s32.totalorder %s30, 1
      %p203 = por %p201, %p202
      %p204 = scmp.ne.s32.totalorder %s193, %s194
      %p205 = scmp.eq.s32.totalorder %s30, 0
      %p206 = por %p204, %p205
      %p207 = scmp.ne.s32.totalorder %s193, %s194
      %p208 = scmp.eq.s32.totalorder %s31, 1
      %p209 = por %p207, %p208
      %p211 = scmp.ne.s32.totalorder %s194, %s210
      %p212 = scmp.eq.s32.totalorder %s31, 0
      %p213 = por %p211, %p212
      %s214 = ssub.s32 %s32, %s51
      %s215 = ssub.s32 %s34, %s43
      %s216 = sor.u32 %s214, %s215
      %s217 = ssub.s32 %s33, %s47
      %s218 = sor.u32 %s216, %s217
      %p219 = scmp.eq.s32.totalorder %s218, 0
      %s221 = sadd.s32 %s220, 1
      %s222 = scalar_select %p219, %s220, %s221
      %p225 = pneg %p219
      %p226 = scmp.eq.s32.totalorder %s25, 1
      %p227 = por %p225, %p226
      %p228 = scmp.ne.s32.totalorder %s220, %s223
      %p229 = scmp.eq.s32.totalorder %s25, 0
      %p230 = por %p228, %p229
      %p231 = scmp.ne.s32.totalorder %s220, %s223
      %p232 = scmp.eq.s32.totalorder %s30, 1
      %p233 = por %p231, %p232
      %p234 = scmp.ne.s32.totalorder %s223, %s224
      %p235 = scmp.eq.s32.totalorder %s30, 0
      %p236 = por %p234, %p235
      %p237 = scmp.ne.s32.totalorder %s223, %s224
      %p238 = scmp.eq.s32.totalorder %s31, 1
      %p239 = por %p237, %p238
      %p241 = scmp.ne.s32.totalorder %s224, %s240
      %p242 = scmp.eq.s32.totalorder %s31, 0
      %p243 = por %p241, %p242
      %s244 = ssub.s32 %s32, %s51
      %s245 = ssub.s32 %s34, %s43
      %s246 = sor.u32 %s244, %s245
      %s247 = ssub.s32 %s33, %s47
      %s248 = sor.u32 %s246, %s247
      %p249 = scmp.eq.s32.totalorder %s248, 0
      %s251 = sadd.s32 %s250, 1
      %s252 = scalar_select %p249, %s250, %s251
      %p255 = pneg %p249
      %p256 = scmp.eq.s32.totalorder %s25, 1
      %p257 = por %p255, %p256
      %p258 = scmp.ne.s32.totalorder %s250, %s253
      %p259 = scmp.eq.s32.totalorder %s25, 0
      %p260 = por %p258, %p259
      %p261 = scmp.ne.s32.totalorder %s250, %s253
      %p262 = scmp.eq.s32.totalorder %s30, 1
      %p263 = por %p261, %p262
      %p264 = scmp.ne.s32.totalorder %s253, %s254
      %p265 = scmp.eq.s32.totalorder %s30, 0
      %p266 = por %p264, %p265
      %p267 = scmp.ne.s32.totalorder %s253, %s254
      %p268 = scmp.eq.s32.totalorder %s31, 1
      %p269 = por %p267, %p268
      %p271 = scmp.ne.s32.totalorder %s254, %s270
      %p272 = scmp.eq.s32.totalorder %s31, 0
      %p273 = por %p271, %p272
      %p274 = scmp.le.s32.totalorder 1, %s25
      %p275 = scmp.lt.s32.totalorder %s25, 3
      %p276 = pnand %p274, %p275
      %p277 = pneg %p276
      // Predicated region
      $region9: #{tpu_custom_call.1} parent=5 // pred_check
        _
      $region10: #{tpu_custom_call.1} parent=5 // pred_check_branch
        %279 = sbr.rel (%p276) target = $region12
      $region11: #{tpu_custom_call.1} parent=5 // pred_region
        %s280 = ssub.s32 %s25, 1
        // Predicated region
        $region13: #{tpu_custom_call.1} parent=11 // pred_check
          %p281 = pneg %p98
        $region14: #{tpu_custom_call.1} parent=11 // pred_check_branch
          %283 = sbr.rel (%p281) target = $region16
        $region15: #{tpu_custom_call.1} parent=11 // pred_region
          %s285 = ssub.s32 256, 256
          %286 = vsyncadd [#allocation6], %s285
          %s287 = smul.addr %s36, 64
          %s288 = scalar_lea.hbm %s1, %s287
          %s289 = sshll.u32 [#allocation5], 4
          %s290 = int_to_ptr.vmem [resolvable:$true] %s289
          %295 = dma.hbm_to_vmem [thread:$0]  %s288, 256, %s290, [#allocation6], 64, 64, 4
        $region16: #{tpu_custom_call.1} parent=11 // pred_fallthru
          _
        // Predicated region
        $region17: #{tpu_custom_call.1} parent=11 // pred_check
          %p296 = pneg %p124
        $region18: #{tpu_custom_call.1} parent=11 // pred_check_branch
          %298 = sbr.rel (%p296) target = $region20
        $region19: #{tpu_custom_call.1} parent=11 // pred_region
          %s300 = ssub.s32 256, 256
          %301 = vsyncadd [#allocation6], %s300
          %s302 = smul.addr %s36, 64
          %s303 = scalar_lea.hbm %s2, %s302
          %s304 = sshll.u32 [#allocation7], 4
          %s305 = int_to_ptr.vmem [resolvable:$true] %s304
          %310 = dma.hbm_to_vmem [thread:$0]  %s303, 256, %s305, [#allocation6], 64, 64, 4
        $region20: #{tpu_custom_call.1} parent=11 // pred_fallthru
          _
        // Predicated region
        $region21: #{tpu_custom_call.1} parent=11 // pred_check
          %p311 = pneg %p150
        $region22: #{tpu_custom_call.1} parent=11 // pred_check_branch
          %313 = sbr.rel (%p311) target = $region24
        $region23: #{tpu_custom_call.1} parent=11 // pred_region
          %s315 = ssub.s32 256, 256
          %316 = vsyncadd [#allocation9], %s315
          %s317 = smul.addr %s36, 64
          %s318 = scalar_lea.hbm %s3, %s317
          %s319 = sshll.u32 [#allocation8], 4
          %s320 = int_to_ptr.vmem [resolvable:$true] %s319
          %325 = dma.hbm_to_vmem [thread:$0]  %s318, 256, %s320, [#allocation9], 64, 64, 4
        $region24: #{tpu_custom_call.1} parent=11 // pred_fallthru
          _
        // Predicated region
        $region25: #{tpu_custom_call.1} parent=11 // pred_check
          %p326 = pneg %p176
        $region26: #{tpu_custom_call.1} parent=11 // pred_check_branch
          %328 = sbr.rel (%p326) target = $region28
        $region27: #{tpu_custom_call.1} parent=11 // pred_region
          %p329 = scmp.lt.s32.totalorder %s36, 0
          %s330 = scalar_select %p329, %s36, 0
          %s331 = smul.addr %s330, 4
          %s332 = scalar_lea.vmem %s4, %s331
        $region28: #{tpu_custom_call.1} parent=11 // pred_fallthru
          _
      $region12: #{tpu_custom_call.1} parent=5 // pred_fallthru
        _
      %p333 = scmp.lt.s32.totalorder %s25, 2
      // Predicated region
      $region29: #{tpu_custom_call.1} parent=5 // pred_check
        %p334 = pneg %p333
      $region30: #{tpu_custom_call.1} parent=5 // pred_check_branch
        %336 = sbr.rel (%p334) target = $region32
      $region31: #{tpu_custom_call.1} parent=5 // pred_region
        // Predicated region
        $region33: #{tpu_custom_call.1} parent=31 // pred_check
          %p337 = pneg %p66
        $region34: #{tpu_custom_call.1} parent=31 // pred_check_branch
          %339 = sbr.rel (%p337) target = $region36
        $region35: #{tpu_custom_call.1} parent=31 // pred_region
          %s340 = sand.u32 %s56, 1
          %s341 = scalar_lea.sflag [#allocation3], %s340
          %s342 = sand.u32 %s56, 1
          %s343 = smul.addr %s342, 8
          %s344 = scalar_lea.vmem [#allocation2], %s343
          %s346 = ssub.s32 128, 128
          %347 = vsyncadd %s341, %s346
          %s348 = sadd.s32 %s34, %s32
          %s349 = smul.addr %s348, 128
          %s350 = scalar_lea.hbm %s0, %s349
          %s352 = sshll.u32 %s344, 4
          %s353 = int_to_ptr.vmem [resolvable:$true] %s352
          %355 = dma.hbm_to_vmem [thread:$0]  %s350, 128, %s353, %s341
        $region36: #{tpu_custom_call.1} parent=31 // pred_fallthru
          _
      $region32: #{tpu_custom_call.1} parent=5 // pred_fallthru
        _
      %p356 = scmp.le.s32.totalorder 1, %s25
      %p357 = scmp.lt.s32.totalorder %s25, 3
      %p358 = pnand %p356, %p357
      %p359 = pneg %p358
      // Predicated region
      $region37: #{tpu_custom_call.1} parent=5 // pred_check
        _
      $region38: #{tpu_custom_call.1} parent=5 // pred_check_branch
        %361 = sbr.rel (%p358) target = $region40
      $region39: #{tpu_custom_call.1} parent=5 // pred_region
        %s362 = ssub.s32 %s25, 1
        %s363 = sand.u32 %s59, 1
        %s364 = scalar_lea.sflag [#allocation3], %s363
        %s365 = sand.u32 %s59, 1
        %s366 = smul.addr %s365, 8
        %s367 = scalar_lea.vmem [#allocation2], %s366
        // Predicated region
        $region41: #{tpu_custom_call.1} parent=39 // pred_check
          %p368 = pneg %p72
        $region42: #{tpu_custom_call.1} parent=39 // pred_check_branch
          %370 = sbr.rel (%p368) target = $region44
        $region43: #{tpu_custom_call.1} parent=39 // pred_region
          %371 = dma.done %s364, 128
        $region44: #{tpu_custom_call.1} parent=39 // pred_fallthru
          _
        // Predicated region
        $region45: #{tpu_custom_call.1} parent=39 // pred_check
          %p372 = pneg %p98
        $region46: #{tpu_custom_call.1} parent=39 // pred_check_branch
          %374 = sbr.rel (%p372) target = $region48
        $region47: #{tpu_custom_call.1} parent=39 // pred_region
          %375 = dma.done [#allocation6], 256
        $region48: #{tpu_custom_call.1} parent=39 // pred_fallthru
          _
        // Predicated region
        $region49: #{tpu_custom_call.1} parent=39 // pred_check
          %p376 = pneg %p124
        $region50: #{tpu_custom_call.1} parent=39 // pred_check_branch
          %378 = sbr.rel (%p376) target = $region52
        $region51: #{tpu_custom_call.1} parent=39 // pred_region
          %379 = dma.done [#allocation6], 256
        $region52: #{tpu_custom_call.1} parent=39 // pred_fallthru
          _
        // Predicated region
        $region53: #{tpu_custom_call.1} parent=39 // pred_check
          %p380 = pneg %p150
        $region54: #{tpu_custom_call.1} parent=39 // pred_check_branch
          %382 = sbr.rel (%p380) target = $region56
        $region55: #{tpu_custom_call.1} parent=39 // pred_region
          %383 = dma.done [#allocation9], 256
        $region56: #{tpu_custom_call.1} parent=39 // pred_fallthru
          _
        %s384 = sand.u32 %s59, 1
        %s385 = scalar_lea.sflag [#allocation3], %s384
        %s386 = sand.u32 %s59, 1
        %s387 = smul.addr %s386, 8
        %s388 = scalar_lea.vmem [#allocation2], %s387
        %p389 = pneg %p72
        %p390 = pneg %p69
        %p391 = pneg %p98
        %p392 = pneg %p95
        %p393 = pneg %p124
        %p394 = pneg %p121
        %p395 = pneg %p150
        %p396 = pneg %p147
        %p397 = scmp.lt.s32.totalorder %s36, 0
        %s398 = scalar_select %p397, %s36, 0
        %s399 = smul.addr %s398, 4
        %s400 = scalar_lea.vmem %s4, %s399
        %p401 = pneg %p176
        %p402 = pneg %p173
        %p403 = pneg %p206
        %p404 = pneg %p203
        %s405 = sand.u32 %s193, 1
        %s406 = scalar_lea.sflag [#allocation4], %s405
        %s407 = sand.u32 %s193, 1
        %s408 = smul.addr %s407, 4
        %s409 = scalar_lea.vmem [#allocation10], %s408
        %p410 = pneg %p236
        %p411 = pneg %p233
        %s412 = sand.u32 %s30, 1
        %s413 = scalar_lea.sflag [#allocation12], %s412
        %s414 = sand.u32 %s223, 1
        %s415 = smul.addr %s414, 4
        %s416 = scalar_lea.vmem [#allocation11], %s415
        %p417 = pneg %p266
        %p418 = pneg %p263
        %s419 = sand.u32 %s30, 1
        %s420 = scalar_lea.sflag [#allocation12], %s419
        %s421 = sand.u32 %s253, 1
        %s422 = smul.addr %s421, 4
        %s423 = scalar_lea.vmem [#allocation13], %s422
        %p424 = scmp.lt.s32.totalorder %s36, 0
        %s425 = scalar_select %p424, %s36, 0
        %s426 = smul.addr %s425, 4
        %s427 = scalar_lea.vmem %s4, %s426
        %v429 = vld [vmem:[%s367] sm:$0xff]
        %v430 = vpack.c.bf16 %v429, %v429
        %v431 = vld [vmem:[%s427] sm:$0x7]
        %v432 = vld [vmem:[#allocation5] sm:$0xf]
        %v433 = vld [vmem:[#allocation5 + $0x4] sm:$0xf]
        %v434 = vld [vmem:[#allocation5 + $0x8] sm:$0xf]
        %v435 = vld [vmem:[#allocation5 + $0xc] sm:$0xf]
        %v436 = vlaneseq
        %v437 = vshrl.u32 %v436, 7
        %v438 = vsub.s32 0, %v437
        %v439 = vrot.slane %v431, %v438
        %v444 = vunpack.c.l.b16 %v432
        %v445 = vunpack.c.l.b16 %v433
        %v446 = vunpack.c.l.b16 %v434
        %v447 = vunpack.c.l.b16 %v435
        %v448 = vpack.c.b16 %v445, %v444
        %v449 = vpack.c.b16 %v447, %v446
        %vm452 = vcmask 261120
        %v454 = vsel %vm452, %v430, 0
        %456 = vmatprep.subr.bf16.mxu0 0
        %457 = vmatpush1.bf16.msra.mxu0 0
        %458 = vmatprep.subr.bf16.mxu0 0
        %459 = vmatpush1.bf16.msra.mxu0 0
        %460 = vmatprep.subr.bf16.mxu0 0
        %461 = vmatpush1.bf16.msra.mxu0 0
        %462 = vmatprep.subr.bf16.mxu0 0
        %463 = vmatpush1.bf16.msra.mxu0 0
        %464 = vmatprep.subr.bf16.mxu0 0
        %465 = vmatpush1.bf16.msra.mxu0 0
        %466 = vmatprep.subr.bf16.mxu0 0
        %467 = vmatpush1.bf16.msra.mxu0 0
        %468 = vmatprep.subr.bf16.mxu0 0
        %469 = vmatpush1.bf16.msra.mxu0 %v449
        %470 = vmatprep.subr.bf16.mxu0 0
        %471 = vmatpush1.bf16.msra.mxu0 %v448
        %472 = vmatprep.subr.bf16.mxu0 0
        %473 = vmatpush2.bf16.msra.mxu0 0
        %474 = vmatprep.subr.bf16.mxu0 0
        %475 = vmatpush2.bf16.msra.mxu0 0
        %476 = vmatprep.subr.bf16.mxu0 0
        %477 = vmatpush2.bf16.msra.mxu0 0
        %478 = vmatprep.subr.bf16.mxu0 0
        %479 = vmatpush2.bf16.msra.mxu0 0
        %480 = vmatprep.subr.bf16.mxu0 0
        %481 = vmatpush2.bf16.msra.mxu0 0
        %482 = vmatprep.subr.bf16.mxu0 0
        %483 = vmatpush2.bf16.msra.mxu0 0
        %484 = vmatprep.subr.bf16.mxu0 0
        %485 = vmatpush2.bf16.msra.mxu0 0
        %486 = vmatprep.subr.bf16.mxu0 0
        %487 = vmatpush2.bf16.msra.mxu0 0
        %488 = vmatprep.mubr.bf16.mxu0 0
        %489 = vmatmul.mubr.bf16.gmra.mxu0 %v454
        %v490 = vpop.f32.mrf.mxu0
        %v491 = vadd.f32 %v439, %v490
        %v492 = vpop.f32.mrf.mxu0
        %v493 = vpop.f32.mrf.mxu0
        %v494 = vpop.f32.mrf.mxu0
        %495 = vdwg.mxu0
        %v496 = vpack.c.bf16 %v491, %v491
        %vm497 = vcmask 257024
        %498 = vst.msk [vmem:[%s409] sm:$0xf] %vm497, %v496
        %v499 = vld [vmem:[#allocation7] sm:$0xf]
        %v500 = vld [vmem:[#allocation7 + $0x4] sm:$0xf]
        %v501 = vld [vmem:[#allocation7 + $0x8] sm:$0xf]
        %v502 = vld [vmem:[#allocation7 + $0xc] sm:$0xf]
        %v503 = vlaneseq
        %v504 = vshrl.u32 %v503, 7
        %v505 = vsub.s32 1, %v504
        %v506 = vrot.slane %v431, %v505
        %v511 = vunpack.c.l.b16 %v499
        %v512 = vunpack.c.l.b16 %v500
        %v513 = vunpack.c.l.b16 %v501
        %v514 = vunpack.c.l.b16 %v502
        %v515 = vpack.c.b16 %v512, %v511
        %v516 = vpack.c.b16 %v514, %v513
        %519 = vmatprep.subr.bf16.mxu0 0
        %520 = vmatpush1.bf16.msra.mxu0 0
        %521 = vmatprep.subr.bf16.mxu0 0
        %522 = vmatpush1.bf16.msra.mxu0 0
        %523 = vmatprep.subr.bf16.mxu0 0
        %524 = vmatpush1.bf16.msra.mxu0 0
        %525 = vmatprep.subr.bf16.mxu0 0
        %526 = vmatpush1.bf16.msra.mxu0 0
        %527 = vmatprep.subr.bf16.mxu0 0
        %528 = vmatpush1.bf16.msra.mxu0 0
        %529 = vmatprep.subr.bf16.mxu0 0
        %530 = vmatpush1.bf16.msra.mxu0 0
        %531 = vmatprep.subr.bf16.mxu0 0
        %532 = vmatpush1.bf16.msra.mxu0 %v516
        %533 = vmatprep.subr.bf16.mxu0 0
        %534 = vmatpush1.bf16.msra.mxu0 %v515
        %535 = vmatprep.subr.bf16.mxu0 0
        %536 = vmatpush2.bf16.msra.mxu0 0
        %537 = vmatprep.subr.bf16.mxu0 0
        %538 = vmatpush2.bf16.msra.mxu0 0
        %539 = vmatprep.subr.bf16.mxu0 0
        %540 = vmatpush2.bf16.msra.mxu0 0
        %541 = vmatprep.subr.bf16.mxu0 0
        %542 = vmatpush2.bf16.msra.mxu0 0
        %543 = vmatprep.subr.bf16.mxu0 0
        %544 = vmatpush2.bf16.msra.mxu0 0
        %545 = vmatprep.subr.bf16.mxu0 0
        %546 = vmatpush2.bf16.msra.mxu0 0
        %547 = vmatprep.subr.bf16.mxu0 0
        %548 = vmatpush2.bf16.msra.mxu0 0
        %549 = vmatprep.subr.bf16.mxu0 0
        %550 = vmatpush2.bf16.msra.mxu0 0
        %551 = vmatprep.mubr.bf16.mxu0 0
        %552 = vmatmul.mubr.bf16.gmra.mxu0 %v454
        %v553 = vpop.f32.mrf.mxu0
        %v554 = vadd.f32 %v506, %v553
        %v555 = vpop.f32.mrf.mxu0
        %v556 = vpop.f32.mrf.mxu0
        %v557 = vpop.f32.mrf.mxu0
        %558 = vdwg.mxu0
        %v559 = vpack.c.bf16 %v554, %v554
        %560 = vst.msk [vmem:[%s416] sm:$0xf] %vm497, %v559
        %v561 = vld [vmem:[#allocation8] sm:$0xf]
        %v562 = vld [vmem:[#allocation8 + $0x4] sm:$0xf]
        %v563 = vld [vmem:[#allocation8 + $0x8] sm:$0xf]
        %v564 = vld [vmem:[#allocation8 + $0xc] sm:$0xf]
        %v565 = vlaneseq
        %v566 = vshrl.u32 %v565, 7
        %v567 = vsub.s32 2, %v566
        %v568 = vrot.slane %v431, %v567
        %v573 = vunpack.c.l.b16 %v561
        %v574 = vunpack.c.l.b16 %v562
        %v575 = vunpack.c.l.b16 %v563
        %v576 = vunpack.c.l.b16 %v564
        %v577 = vpack.c.b16 %v574, %v573
        %v578 = vpack.c.b16 %v576, %v575
        %581 = vmatprep.subr.bf16.mxu0 0
        %582 = vmatpush1.bf16.msra.mxu0 0
        %583 = vmatprep.subr.bf16.mxu0 0
        %584 = vmatpush1.bf16.msra.mxu0 0
        %585 = vmatprep.subr.bf16.mxu0 0
        %586 = vmatpush1.bf16.msra.mxu0 0
        %587 = vmatprep.subr.bf16.mxu0 0
        %588 = vmatpush1.bf16.msra.mxu0 0
        %589 = vmatprep.subr.bf16.mxu0 0
        %590 = vmatpush1.bf16.msra.mxu0 0
        %591 = vmatprep.subr.bf16.mxu0 0
        %592 = vmatpush1.bf16.msra.mxu0 0
        %593 = vmatprep.subr.bf16.mxu0 0
        %594 = vmatpush1.bf16.msra.mxu0 %v578
        %595 = vmatprep.subr.bf16.mxu0 0
        %596 = vmatpush1.bf16.msra.mxu0 %v577
        %597 = vmatprep.subr.bf16.mxu0 0
        %598 = vmatpush2.bf16.msra.mxu0 0
        %599 = vmatprep.subr.bf16.mxu0 0
        %600 = vmatpush2.bf16.msra.mxu0 0
        %601 = vmatprep.subr.bf16.mxu0 0
        %602 = vmatpush2.bf16.msra.mxu0 0
        %603 = vmatprep.subr.bf16.mxu0 0
        %604 = vmatpush2.bf16.msra.mxu0 0
        %605 = vmatprep.subr.bf16.mxu0 0
        %606 = vmatpush2.bf16.msra.mxu0 0
        %607 = vmatprep.subr.bf16.mxu0 0
        %608 = vmatpush2.bf16.msra.mxu0 0
        %609 = vmatprep.subr.bf16.mxu0 0
        %610 = vmatpush2.bf16.msra.mxu0 0
        %611 = vmatprep.subr.bf16.mxu0 0
        %612 = vmatpush2.bf16.msra.mxu0 0
        %613 = vmatprep.mubr.bf16.mxu0 0
        %614 = vmatmul.mubr.bf16.gmra.mxu0 %v454
        %v615 = vpop.f32.mrf.mxu0
        %v616 = vadd.f32 %v568, %v615
        %v617 = vpop.f32.mrf.mxu0
        %v618 = vpop.f32.mrf.mxu0
        %v619 = vpop.f32.mrf.mxu0
        %620 = vdwg.mxu0
        %v621 = vpack.c.bf16 %v616, %v616
        %622 = vst.msk [vmem:[%s423] sm:$0xf] %vm497, %v621
        %s623 = sand.u32 %s193, 1
        %s624 = scalar_lea.sflag [#allocation4], %s623
        %s625 = sand.u32 %s193, 1
        %s626 = smul.addr %s625, 4
        %s627 = scalar_lea.vmem [#allocation10], %s626
        %s628 = sand.u32 %s30, 1
        %s629 = scalar_lea.sflag [#allocation12], %s628
        %s630 = sand.u32 %s223, 1
        %s631 = smul.addr %s630, 4
        %s632 = scalar_lea.vmem [#allocation11], %s631
        %s633 = sand.u32 %s30, 1
        %s634 = scalar_lea.sflag [#allocation12], %s633
        %s635 = sand.u32 %s253, 1
        %s636 = smul.addr %s635, 4
        %s637 = scalar_lea.vmem [#allocation13], %s636
        // Predicated region
        $region57: #{tpu_custom_call.1} parent=39 // pred_check
          %p638 = pneg %p203
        $region58: #{tpu_custom_call.1} parent=39 // pred_check_branch
          %640 = sbr.rel (%p638) target = $region60
        $region59: #{tpu_custom_call.1} parent=39 // pred_region
          %s642 = ssub.s32 64, 64
          %643 = vsyncadd %s624, %s642
          %s644 = sadd.s32 %s36, %s37
          %s645 = sadd.s32 %s644, %s35
          %s646 = smul.addr %s645, 64
          %s647 = scalar_lea.hbm %s5, %s646
          %s649 = sshll.u32 %s627, 4
          %s650 = int_to_ptr.vmem [resolvable:$true] %s649
          %652 = dma.vmem_to_hbm [thread:$0]  %s650, 64, %s647, %s624
        $region60: #{tpu_custom_call.1} parent=39 // pred_fallthru
          _
        // Predicated region
        $region61: #{tpu_custom_call.1} parent=39 // pred_check
          %p653 = pneg %p233
        $region62: #{tpu_custom_call.1} parent=39 // pred_check_branch
          %655 = sbr.rel (%p653) target = $region64
        $region63: #{tpu_custom_call.1} parent=39 // pred_region
          %s657 = ssub.s32 64, 64
          %658 = vsyncadd %s629, %s657
          %s659 = sadd.s32 %s36, %s37
          %s660 = sadd.s32 %s659, %s35
          %s661 = smul.addr %s660, 64
          %s662 = scalar_lea.hbm %s6, %s661
          %s664 = sshll.u32 %s632, 4
          %s665 = int_to_ptr.vmem [resolvable:$true] %s664
          %667 = dma.vmem_to_hbm [thread:$0]  %s665, 64, %s662, %s629
        $region64: #{tpu_custom_call.1} parent=39 // pred_fallthru
          _
        // Predicated region
        $region65: #{tpu_custom_call.1} parent=39 // pred_check
          %p668 = pneg %p263
        $region66: #{tpu_custom_call.1} parent=39 // pred_check_branch
          %670 = sbr.rel (%p668) target = $region68
        $region67: #{tpu_custom_call.1} parent=39 // pred_region
          %s672 = ssub.s32 64, 64
          %673 = vsyncadd %s634, %s672
          %s674 = sadd.s32 %s36, %s37
          %s675 = sadd.s32 %s674, %s35
          %s676 = smul.addr %s675, 64
          %s677 = scalar_lea.hbm %s7, %s676
          %s679 = sshll.u32 %s637, 4
          %s680 = int_to_ptr.vmem [resolvable:$true] %s679
          %682 = dma.vmem_to_hbm [thread:$0]  %s680, 64, %s677, %s634
        $region68: #{tpu_custom_call.1} parent=39 // pred_fallthru
          _
      $region40: #{tpu_custom_call.1} parent=5 // pred_fallthru
        _
      %p683 = scmp.le.s32.totalorder 2, %s25
      // Predicated region
      $region69: #{tpu_custom_call.1} parent=5 // pred_check
        %p684 = pneg %p683
      $region70: #{tpu_custom_call.1} parent=5 // pred_check_branch
        %686 = sbr.rel (%p684) target = $region72
      $region71: #{tpu_custom_call.1} parent=5 // pred_region
        %s687 = ssub.s32 %s25, 2
        // Predicated region
        $region73: #{tpu_custom_call.1} parent=71 // pred_check
          %p688 = pneg %p209
        $region74: #{tpu_custom_call.1} parent=71 // pred_check_branch
          %690 = sbr.rel (%p688) target = $region76
        $region75: #{tpu_custom_call.1} parent=71 // pred_region
          %s691 = sand.u32 %s194, 1
          %s692 = scalar_lea.sflag [#allocation4], %s691
          %s693 = sand.u32 %s194, 1
          %s694 = smul.addr %s693, 4
          %s695 = scalar_lea.vmem [#allocation10], %s694
          %696 = dma.done %s692, 64
        $region76: #{tpu_custom_call.1} parent=71 // pred_fallthru
          _
        // Predicated region
        $region77: #{tpu_custom_call.1} parent=71 // pred_check
          %p697 = pneg %p239
        $region78: #{tpu_custom_call.1} parent=71 // pred_check_branch
          %699 = sbr.rel (%p697) target = $region80
        $region79: #{tpu_custom_call.1} parent=71 // pred_region
          %s700 = sand.u32 %s31, 1
          %s701 = scalar_lea.sflag [#allocation12], %s700
          %s702 = sand.u32 %s224, 1
          %s703 = smul.addr %s702, 4
          %s704 = scalar_lea.vmem [#allocation11], %s703
          %705 = dma.done %s701, 64
        $region80: #{tpu_custom_call.1} parent=71 // pred_fallthru
          _
        // Predicated region
        $region81: #{tpu_custom_call.1} parent=71 // pred_check
          %p706 = pneg %p269
        $region82: #{tpu_custom_call.1} parent=71 // pred_check_branch
          %708 = sbr.rel (%p706) target = $region84
        $region83: #{tpu_custom_call.1} parent=71 // pred_region
          %s709 = sand.u32 %s31, 1
          %s710 = scalar_lea.sflag [#allocation12], %s709
          %s711 = sand.u32 %s254, 1
          %s712 = smul.addr %s711, 4
          %s713 = scalar_lea.vmem [#allocation13], %s712
          %714 = dma.done %s710, 64
        $region84: #{tpu_custom_call.1} parent=71 // pred_fallthru
          _
      $region72: #{tpu_custom_call.1} parent=5 // pred_fallthru
        _
    $region6: #{tpu_custom_call.1} parent=1 // loop_footer
      %s29 = sadd.s32 1, %s25
    $region7: #{tpu_custom_call.1} parent=1 // loop_footer_branch
      %24 = sbr.rel target = $region3
    $region8: #{tpu_custom_call.1} parent=1 // loop_exit
      _
    %715 = vsyncpa [#allocation3], 1
    %s716 = scalar_lea.sflag [#allocation3], 1
    %717 = vsyncpa %s716, 1
    %718 = vsyncpa [#allocation6], 1
    %719 = vsyncpa [#allocation9], 1
    %720 = vsyncpa [#allocation4], 1
    %s721 = scalar_lea.sflag [#allocation4], 1
    %722 = vsyncpa %s721, 1
    %723 = vsyncpa [#allocation12], 1
    %s724 = scalar_lea.sflag [#allocation12], 1
    %725 = vsyncpa %s724, 1

</llo_original>
